<compile_context>
chip_gen: v7x
topology: tpu7x:2x2x1
jax: 0.10.0
libtpu: 0.0.40
codegen_flags: <defaults>
</compile_context>

<pallas_src>
import jax
import jax.numpy as jnp
from jax import lax
from jax.experimental import pallas as pl
from jax.experimental.pallas import tpu as pltpu

EMBEDDING_DIM = 10
CORPUS = "the quick brown fox jumps over the lazy dog".split()
VOCAB = sorted(set(CORPUS))          # deterministic ordering
VOCAB_SIZE = len(VOCAB)              # 8
CONTEXT_SIZE = 4                     # e.g. window of 2 on each side
LANE = 128                           # f32 lane width


def _round_up(x, m):
    return ((x + m - 1) // m) * m


def cbow_kernel(ctx_ref, emb_ref, w_ref, b_ref, out_ref):
    # ctx_ref : VMEM (TB, C)  int32 -- context word ids for this batch tile
    # emb_ref : VMEM (Vp, Dp) f32   -- zero-padded embedding table
    # w_ref   : VMEM (Dp, Vp) f32   -- zero-padded, PRE-TRANSPOSED linear weight
    # b_ref   : VMEM (1, Vp)  f32   -- zero-padded bias
    # out_ref : VMEM (TB, Vp) f32   -- logits tile for this grid step
    tile_b, c = ctx_ref.shape
    v_p = emb_ref.shape[0]
    inv_c = 1.0 / c

    ids = ctx_ref[...]                                            # (TB, C)
    lane_iota = lax.broadcasted_iota(jnp.int32, (tile_b, v_p), 1)  # (TB, Vp)

    # counts[b, v] = #occurrences of word v in context row b.
    # C is tiny & static -> unrolled compare+add over full (TB, Vp) vregs.
    counts = jnp.zeros((tile_b, v_p), jnp.float32)
    for i in range(c):
        counts = counts + (ids[:, i:i + 1] == lane_iota).astype(jnp.float32)

    # Mean context embedding on the MXU: (TB, Vp) x (Vp, Dp) -> (TB, Dp).
    mean = jnp.dot(counts * inv_c, emb_ref[...],
                   preferred_element_type=jnp.float32)

    # Output projection, weight already in (Dp, Vp): (TB, Dp) x (Dp, Vp).
    logits = jnp.dot(mean, w_ref[...], preferred_element_type=jnp.float32)
    out_ref[...] = (logits + b_ref[...]).astype(out_ref.dtype)


def pad_params(emb_table, lin_w, lin_b):
    """Zero-pad (and pre-transpose the Linear weight) ONCE at init time."""
    V, D = emb_table.shape
    Vp = _round_up(max(V, LANE), LANE)
    Dp = _round_up(max(D, LANE), LANE)
    emb_p = jnp.zeros((Vp, Dp), jnp.float32).at[:V, :D].set(emb_table)
    # nn.Linear stores weight as (V, D); transpose to the canonical MXU layout.
    w_t_p = jnp.zeros((Dp, Vp), jnp.float32).at[:D, :V].set(lin_w.T)
    b_p = jnp.zeros((1, Vp), jnp.float32).at[0, :V].set(lin_b)
    return emb_p, w_t_p, b_p


def cbow_forward_batched(contexts, emb_p, w_t_p, b_p, vocab_size, *, tile_b=128):
    """contexts: (B, C) int32 -> logits (B, V).  tile_b: 128 (v5e) / 256 (v6e, v7x)."""
    B, C = contexts.shape
    Vp, Dp = emb_p.shape
    Bp = _round_up(B, tile_b)
    contexts = contexts.astype(jnp.int32)
    if Bp != B:
        contexts = jnp.concatenate(
            [contexts, jnp.zeros((Bp - B, C), jnp.int32)], axis=0)

    out = pl.pallas_call(
        cbow_kernel,
        out_shape=jax.ShapeDtypeStruct((Bp, Vp), jnp.float32),
        grid=(Bp // tile_b,),
        in_specs=[
            pl.BlockSpec((tile_b, C), lambda i: (i, 0)),   # context ids
            pl.BlockSpec((Vp, Dp), lambda i: (0, 0)),      # embedding table
            pl.BlockSpec((Dp, Vp), lambda i: (0, 0)),      # pre-transposed weight
            pl.BlockSpec((1, Vp), lambda i: (0, 0)),       # bias
        ],
        out_specs=pl.BlockSpec((tile_b, Vp), lambda i: (i, 0)),
        compiler_params=pltpu.CompilerParams(
            dimension_semantics=("parallel",)),
    )(contexts, emb_p, w_t_p, b_p)
    return out[:B, :vocab_size]


def cbow_forward(context, emb_p, w_t_p, b_p, vocab_size):
    """Exact analogue of the PyTorch module forward: (C,) int ids -> (1, V)."""
    ctx_b = context.reshape(1, -1).astype(jnp.int32)
    return cbow_forward_batched(ctx_b, emb_p, w_t_p, b_p, vocab_size)


def cbow_reference(context, emb_table, lin_w, lin_b):
    embeds = emb_table[context]                        # (C, D)
    mean_emb = jnp.mean(embeds, axis=0).reshape(1, -1)
    return mean_emb @ lin_w.T + lin_b.reshape(1, -1)


if __name__ == "__main__":
    key = jax.random.PRNGKey(0)
    k_emb, k_w, k_b, k_ctx = jax.random.split(key, 4)

    # Deterministic parameter init (shapes match nn.Embedding / nn.Linear).
    emb_table = jax.random.normal(k_emb, (VOCAB_SIZE, EMBEDDING_DIM), jnp.float32)
    bound = 1.0 / (EMBEDDING_DIM ** 0.5)
    lin_w = jax.random.uniform(k_w, (VOCAB_SIZE, EMBEDDING_DIM), jnp.float32,
                               minval=-bound, maxval=bound)
    lin_b = jax.random.uniform(k_b, (VOCAB_SIZE,), jnp.float32,
                               minval=-bound, maxval=bound)

    # Pad / pre-transpose once, outside the hot path.
    emb_p, w_t_p, b_p = pad_params(emb_table, lin_w, lin_b)

    # Batched path: 256 contexts of 4 ids each -> 2 grid steps of 128 rows
    # (so the "parallel" batch axis can actually shard on v7x megacore).
    B = 256
    contexts = jax.random.randint(k_ctx, (B, CONTEXT_SIZE), 0, VOCAB_SIZE, jnp.int32)

    out = cbow_forward_batched(contexts, emb_p, w_t_p, b_p, VOCAB_SIZE)
    out = jax.block_until_ready(out)
    ref = jax.vmap(lambda c: cbow_reference(c, emb_table, lin_w, lin_b)[0])(contexts)
    assert out.shape == (B, VOCAB_SIZE)
    assert jnp.allclose(out, ref, atol=1e-5, rtol=1e-5), (out, ref)

    # Single-context path (exact original module semantics).
    single = cbow_forward(contexts[0], emb_p, w_t_p, b_p, VOCAB_SIZE)
    single = jax.block_until_ready(single)
    ref1 = cbow_reference(contexts[0], emb_table, lin_w, lin_b)
    assert single.shape == (1, VOCAB_SIZE)
    assert jnp.allclose(single, ref1, atol=1e-5, rtol=1e-5), (single, ref1)

    # TODO(synk): for realistic vocab sizes, add a second "parallel" grid axis
    # over Vp tiles and cast emb_p/w_t_p to bf16 (keep f32 accumulation).
    print("KERNEL_OK")
</pallas_src>

<mosaic_0001>
module attributes {stable_mosaic.version = 11 : i64} {
  func.func @cbow_kernel(%arg0: i32, %arg1: memref<128x4xi32, #tpu.memory_space<vmem>>, %arg2: memref<128x128xf32, #tpu.memory_space<vmem>>, %arg3: memref<128x128xf32, #tpu.memory_space<vmem>>, %arg4: memref<1x128xf32, #tpu.memory_space<vmem>>, %arg5: memref<128x128xf32, #tpu.memory_space<vmem>>) attributes {dimension_semantics = [#tpu.dimension_semantics<parallel>], iteration_bounds = array<i64: 2>, scalar_prefetch = 0 : i64, scratch_operands = 0 : i64, tpu.core_type = #tpu.core_type<tc>, window_params = [{transform_indices = @transform_0, window_bounds = array<i64: 128, 4>}, {pipeline_mode = #tpu.pipeline_mode<synchronous>, transform_indices = @transform_1, window_bounds = array<i64: 128, 128>}, {pipeline_mode = #tpu.pipeline_mode<synchronous>, transform_indices = @transform_2, window_bounds = array<i64: 128, 128>}, {pipeline_mode = #tpu.pipeline_mode<synchronous>, transform_indices = @transform_3, window_bounds = array<i64: 1, 128>}, {transform_indices = @transform_4, window_bounds = array<i64: 128, 128>}]} {
    %c0 = arith.constant 0 : index
    %c0_0 = arith.constant 0 : index
    %0 = vector.load %arg1[%c0, %c0_0] : memref<128x4xi32, #tpu.memory_space<vmem>>, vector<128x4xi32>
    %1 = tpu.iota {dimensions = array<i32: 1>} : vector<128x128xi32>
    %cst = arith.constant 0.000000e+00 : f32
    %2 = vector.broadcast %cst : f32 to vector<128x128xf32>
    %3 = vector.extract_strided_slice %0 {offsets = [0, 0], sizes = [128, 1], strides = [1, 1]} : vector<128x4xi32> to vector<128x1xi32>
    %4 = vector.broadcast %3 : vector<128x1xi32> to vector<128x128xi32>
    %5 = arith.cmpi eq, %4, %1 : vector<128x128xi32>
    %6 = arith.extui %5 : vector<128x128xi1> to vector<128x128xi32>
    %7 = arith.sitofp %6 : vector<128x128xi32> to vector<128x128xf32>
    %8 = arith.addf %2, %7 : vector<128x128xf32>
    %9 = vector.extract_strided_slice %0 {offsets = [0, 1], sizes = [128, 1], strides = [1, 1]} : vector<128x4xi32> to vector<128x1xi32>
    %10 = vector.broadcast %9 : vector<128x1xi32> to vector<128x128xi32>
    %11 = arith.cmpi eq, %10, %1 : vector<128x128xi32>
    %12 = arith.extui %11 : vector<128x128xi1> to vector<128x128xi32>
    %13 = arith.sitofp %12 : vector<128x128xi32> to vector<128x128xf32>
    %14 = arith.addf %8, %13 : vector<128x128xf32>
    %15 = vector.extract_strided_slice %0 {offsets = [0, 2], sizes = [128, 1], strides = [1, 1]} : vector<128x4xi32> to vector<128x1xi32>
    %16 = vector.broadcast %15 : vector<128x1xi32> to vector<128x128xi32>
    %17 = arith.cmpi eq, %16, %1 : vector<128x128xi32>
    %18 = arith.extui %17 : vector<128x128xi1> to vector<128x128xi32>
    %19 = arith.sitofp %18 : vector<128x128xi32> to vector<128x128xf32>
    %20 = arith.addf %14, %19 : vector<128x128xf32>
    %21 = vector.extract_strided_slice %0 {offsets = [0, 3], sizes = [128, 1], strides = [1, 1]} : vector<128x4xi32> to vector<128x1xi32>
    %22 = vector.broadcast %21 : vector<128x1xi32> to vector<128x128xi32>
    %23 = arith.cmpi eq, %22, %1 : vector<128x128xi32>
    %24 = arith.extui %23 : vector<128x128xi1> to vector<128x128xi32>
    %25 = arith.sitofp %24 : vector<128x128xi32> to vector<128x128xf32>
    %26 = arith.addf %20, %25 : vector<128x128xf32>
    %cst_1 = arith.constant 2.500000e-01 : f32
    %27 = vector.broadcast %cst_1 : f32 to vector<128x128xf32>
    %28 = arith.mulf %26, %27 : vector<128x128xf32>
    %c0_2 = arith.constant 0 : index
    %c0_3 = arith.constant 0 : index
    %29 = vector.load %arg2[%c0_2, %c0_3] : memref<128x128xf32, #tpu.memory_space<vmem>>, vector<128x128xf32>
    %cst_4 = arith.constant dense<0.000000e+00> : vector<128x128xf32>
    %30 = tpu.matmul %28, %29, %cst_4 {dimension_numbers = #tpu.dot_dimension_numbers<[1], [0], [0], [1], [0, 0, 1, 1], [], []>} : vector<128x128xf32>, vector<128x128xf32>, vector<128x128xf32> -> vector<128x128xf32>
    %c0_5 = arith.constant 0 : index
    %c0_6 = arith.constant 0 : index
    %31 = vector.load %arg3[%c0_5, %c0_6] : memref<128x128xf32, #tpu.memory_space<vmem>>, vector<128x128xf32>
    %cst_7 = arith.constant dense<0.000000e+00> : vector<128x128xf32>
    %32 = tpu.matmul %30, %31, %cst_7 {dimension_numbers = #tpu.dot_dimension_numbers<[1], [0], [0], [1], [0, 0, 1, 1], [], []>} : vector<128x128xf32>, vector<128x128xf32>, vector<128x128xf32> -> vector<128x128xf32>
    %c0_8 = arith.constant 0 : index
    %c0_9 = arith.constant 0 : index
    %33 = vector.load %arg4[%c0_8, %c0_9] : memref<1x128xf32, #tpu.memory_space<vmem>>, vector<1x128xf32>
    %34 = vector.broadcast %33 : vector<1x128xf32> to vector<128x128xf32>
    %35 = arith.addf %32, %34 : vector<128x128xf32>
    %c0_10 = arith.constant 0 : index
    %c0_11 = arith.constant 0 : index
    %36 = vector.load %arg5[%c0_10, %c0_11] : memref<128x128xf32, #tpu.memory_space<vmem>>, vector<128x128xf32>
    tpu.vector_store %arg5[%c0_10, %c0_11], %35 {strides = array<i32>} : memref<128x128xf32, #tpu.memory_space<vmem>>, vector<128x128xf32>,
    return
  }
  func.func @transform_0(%arg0: i32) -> (i32, i32) {
    %c0_i32 = arith.constant 0 : i32
    %c0_i32_0 = arith.constant 0 : i32
    return %arg0, %c0_i32 : i32, i32
  }
  func.func @transform_1(%arg0: i32) -> (i32, i32) {
    %c0_i32 = arith.constant 0 : i32
    %c0_i32_0 = arith.constant 0 : i32
    %c0_i32_1 = arith.constant 0 : i32
    return %c0_i32, %c0_i32_0 : i32, i32
  }
  func.func @transform_2(%arg0: i32) -> (i32, i32) {
    %c0_i32 = arith.constant 0 : i32
    %c0_i32_0 = arith.constant 0 : i32
    %c0_i32_1 = arith.constant 0 : i32
    return %c0_i32, %c0_i32_0 : i32, i32
  }
  func.func @transform_3(%arg0: i32) -> (i32, i32) {
    %c0_i32 = arith.constant 0 : i32
    %c0_i32_0 = arith.constant 0 : i32
    %c0_i32_1 = arith.constant 0 : i32
    return %c0_i32, %c0_i32_0 : i32, i32
  }
  func.func @transform_4(%arg0: i32) -> (i32, i32) {
    %c0_i32 = arith.constant 0 : i32
    %c0_i32_0 = arith.constant 0 : i32
    return %arg0, %c0_i32 : i32, i32
  }
}

</mosaic_0001>

<llo_original>
// kernel: tpu_custom_call.1
$region0: #{tpu_custom_call.1}
  #allocation0 [shape = 'u32[]', space=smem, size = 0x4, offset = 0x4, fixed_abs, tag = 'smem constant byte address 0x4 - core index']
  #allocation1 [shape = 'u32[144,128]{1,0:T(1,128)}', space=vmem, size = 0x12000, scoped, tag = 'internal scratch']
  %s0 = inlined_call_operand.vmem [shape: s32[256,4], index: 0, kind: input, shape index: {}]
  %s1 = inlined_call_operand.vmem [shape: f32[128,128], index: 1, kind: input, shape index: {}]
  %s2 = inlined_call_operand.vmem [shape: f32[128,128], index: 2, kind: input, shape index: {}]
  %s3 = inlined_call_operand.vmem [shape: f32[1,128], index: 3, kind: input, shape index: {}]
  %s4 = inlined_call_operand.hbm [shape: f32[256,128], index: 4, kind: output, shape index: {}]
  %s5 = sld [smem:[#allocation0]]
  $region49: #{tpu_custom_call.1} parent=0
    _
  %s7 = ssub.s32 1, %s5
  %s8 = scalar_select 0, %s7, %s5
  $region1: #{tpu_custom_call.1} parent=0
    #allocation2 [shape = 'u8[131072]{0}', space=vmem, size = 0x20000, scoped, tag = 'output window, operand 0']
    #allocation3 [shape = 's32[2]{0}', space=sflag, size = 0x8, scoped, tag = 'scoped memory for tpu_custom_call.1']
    %9 = vsyncpa [#allocation3], 0
    %s10 = scalar_lea.sflag [#allocation3], 1
    %11 = vsyncpa %s10, 0
    loop: start=0, step=1, limit=4
    $region2: #{tpu_custom_call.1} parent=1 // loop_pre_header
      _
    $region3: #{tpu_custom_call.1} parent=1 // loop_header
      %s13 = sphi 0, %s17
      %p14 = scmp.ge.s32.totalorder %s13, 4
      %s23 = sphi 0, %s25
      %s26 = sphi 0, %s23
      %s27 = sphi 0, %s26
      %s43 = sphi 0, %s27
      %s47 = sphi 0, %s47
      %s49 = sphi 0, %s47
      %s50 = sphi 0, %s49
      %s64 = sphi 0, %s50
      %s68 = sphi 0, %s68
      %s70 = sphi 0, %s68
      %s71 = sphi 0, %s70
      %s85 = sphi 0, %s71
      %s89 = sphi 0, %s89
      %s91 = sphi 0, %s89
      %s92 = sphi 0, %s91
      %s106 = sphi 0, %s92
      %s112 = sphi 0, %s114
      %s115 = sphi 0, %s112
      %s116 = sphi 0, %s115
      %s132 = sphi 0, %s116
    $region4: #{tpu_custom_call.1} parent=1 // loop_header_branch
      %16 = sbr.rel (%p14) target = $region8
    $region5: #{tpu_custom_call.1} parent=1 // loop_body
      %s18 = ssub.s32 %s13, 1
      %s19 = ssub.s32 %s13, 2
      %s20 = sadd.s32 %s13, 1
      %s21 = ssub.s32 %s13, %s20
      %p22 = scmp.eq.s32.totalorder %s21, 0
      %s24 = sadd.s32 %s23, 1
      %s25 = scalar_select %p22, %s23, %s24
      %p28 = pneg %p22
      %p29 = scmp.eq.s32.totalorder %s13, 1
      %p30 = por %p28, %p29
      %p31 = scmp.ne.s32.totalorder %s23, %s26
      %p32 = scmp.eq.s32.totalorder %s13, 0
      %p33 = por %p31, %p32
      %p34 = scmp.ne.s32.totalorder %s23, %s26
      %p35 = scmp.eq.s32.totalorder %s18, 1
      %p36 = por %p34, %p35
      %p37 = scmp.ne.s32.totalorder %s26, %s27
      %p38 = scmp.eq.s32.totalorder %s18, 0
      %p39 = por %p37, %p38
      %p40 = scmp.ne.s32.totalorder %s26, %s27
      %p41 = scmp.eq.s32.totalorder %s19, 1
      %p42 = por %p40, %p41
      %p44 = scmp.ne.s32.totalorder %s27, %s43
      %p45 = scmp.eq.s32.totalorder %s19, 0
      %p46 = por %p44, %p45
      %s48 = sadd.s32 %s47, 1
      %p51 = scmp.eq.s32.totalorder %s13, 1
      %p52 = scmp.ne.s32.totalorder %s47, %s49
      %p53 = scmp.eq.s32.totalorder %s13, 0
      %p54 = por %p52, %p53
      %p55 = scmp.ne.s32.totalorder %s47, %s49
      %p56 = scmp.eq.s32.totalorder %s18, 1
      %p57 = por %p55, %p56
      %p58 = scmp.ne.s32.totalorder %s49, %s50
      %p59 = scmp.eq.s32.totalorder %s18, 0
      %p60 = por %p58, %p59
      %p61 = scmp.ne.s32.totalorder %s49, %s50
      %p62 = scmp.eq.s32.totalorder %s19, 1
      %p63 = por %p61, %p62
      %p65 = scmp.ne.s32.totalorder %s50, %s64
      %p66 = scmp.eq.s32.totalorder %s19, 0
      %p67 = por %p65, %p66
      %s69 = sadd.s32 %s68, 1
      %p72 = scmp.eq.s32.totalorder %s13, 1
      %p73 = scmp.ne.s32.totalorder %s68, %s70
      %p74 = scmp.eq.s32.totalorder %s13, 0
      %p75 = por %p73, %p74
      %p76 = scmp.ne.s32.totalorder %s68, %s70
      %p77 = scmp.eq.s32.totalorder %s18, 1
      %p78 = por %p76, %p77
      %p79 = scmp.ne.s32.totalorder %s70, %s71
      %p80 = scmp.eq.s32.totalorder %s18, 0
      %p81 = por %p79, %p80
      %p82 = scmp.ne.s32.totalorder %s70, %s71
      %p83 = scmp.eq.s32.totalorder %s19, 1
      %p84 = por %p82, %p83
      %p86 = scmp.ne.s32.totalorder %s71, %s85
      %p87 = scmp.eq.s32.totalorder %s19, 0
      %p88 = por %p86, %p87
      %s90 = sadd.s32 %s89, 1
      %p93 = scmp.eq.s32.totalorder %s13, 1
      %p94 = scmp.ne.s32.totalorder %s89, %s91
      %p95 = scmp.eq.s32.totalorder %s13, 0
      %p96 = por %p94, %p95
      %p97 = scmp.ne.s32.totalorder %s89, %s91
      %p98 = scmp.eq.s32.totalorder %s18, 1
      %p99 = por %p97, %p98
      %p100 = scmp.ne.s32.totalorder %s91, %s92
      %p101 = scmp.eq.s32.totalorder %s18, 0
      %p102 = por %p100, %p101
      %p103 = scmp.ne.s32.totalorder %s91, %s92
      %p104 = scmp.eq.s32.totalorder %s19, 1
      %p105 = por %p103, %p104
      %p107 = scmp.ne.s32.totalorder %s92, %s106
      %p108 = scmp.eq.s32.totalorder %s19, 0
      %p109 = por %p107, %p108
      %s110 = ssub.s32 %s13, %s20
      %p111 = scmp.eq.s32.totalorder %s110, 0
      %s113 = sadd.s32 %s112, 1
      %s114 = scalar_select %p111, %s112, %s113
      %p117 = pneg %p111
      %p118 = scmp.eq.s32.totalorder %s13, 1
      %p119 = por %p117, %p118
      %p120 = scmp.ne.s32.totalorder %s112, %s115
      %p121 = scmp.eq.s32.totalorder %s13, 0
      %p122 = por %p120, %p121
      %p123 = scmp.ne.s32.totalorder %s112, %s115
      %p124 = scmp.eq.s32.totalorder %s18, 1
      %p125 = por %p123, %p124
      %p126 = scmp.ne.s32.totalorder %s115, %s116
      %p127 = scmp.eq.s32.totalorder %s18, 0
      %p128 = por %p126, %p127
      %p129 = scmp.ne.s32.totalorder %s115, %s116
      %p130 = scmp.eq.s32.totalorder %s19, 1
      %p131 = por %p129, %p130
      %p133 = scmp.ne.s32.totalorder %s116, %s132
      %p134 = scmp.eq.s32.totalorder %s19, 0
      %p135 = por %p133, %p134
      %p136 = scmp.le.s32.totalorder 1, %s13
      %p137 = scmp.lt.s32.totalorder %s13, 3
      %p138 = pnand %p136, %p137
      %p139 = pneg %p138
      // Predicated region
      $region9: #{tpu_custom_call.1} parent=5 // pred_check
        _
      $region10: #{tpu_custom_call.1} parent=5 // pred_check_branch
        %141 = sbr.rel (%p138) target = $region12
      $region11: #{tpu_custom_call.1} parent=5 // pred_region
        %s142 = ssub.s32 %s13, 1
        // Predicated region
        $region13: #{tpu_custom_call.1} parent=11 // pred_check
          %p143 = pneg %p60
        $region14: #{tpu_custom_call.1} parent=11 // pred_check_branch
          %145 = sbr.rel (%p143) target = $region16
        $region15: #{tpu_custom_call.1} parent=11 // pred_region
          _
        $region16: #{tpu_custom_call.1} parent=11 // pred_fallthru
          _
        // Predicated region
        $region17: #{tpu_custom_call.1} parent=11 // pred_check
          %p146 = pneg %p81
        $region18: #{tpu_custom_call.1} parent=11 // pred_check_branch
          %148 = sbr.rel (%p146) target = $region20
        $region19: #{tpu_custom_call.1} parent=11 // pred_region
          _
        $region20: #{tpu_custom_call.1} parent=11 // pred_fallthru
          _
        // Predicated region
        $region21: #{tpu_custom_call.1} parent=11 // pred_check
          %p149 = pneg %p102
        $region22: #{tpu_custom_call.1} parent=11 // pred_check_branch
          %151 = sbr.rel (%p149) target = $region24
        $region23: #{tpu_custom_call.1} parent=11 // pred_region
          _
        $region24: #{tpu_custom_call.1} parent=11 // pred_fallthru
          _
      $region12: #{tpu_custom_call.1} parent=5 // pred_fallthru
        _
      %p152 = scmp.lt.s32.totalorder %s13, 2
      // Predicated region
      $region25: #{tpu_custom_call.1} parent=5 // pred_check
        %p153 = pneg %p152
      $region26: #{tpu_custom_call.1} parent=5 // pred_check_branch
        %155 = sbr.rel (%p153) target = $region28
      $region27: #{tpu_custom_call.1} parent=5 // pred_region
        // Predicated region
        $region29: #{tpu_custom_call.1} parent=27 // pred_check
          %p156 = pneg %p33
        $region30: #{tpu_custom_call.1} parent=27 // pred_check_branch
          %158 = sbr.rel (%p156) target = $region32
        $region31: #{tpu_custom_call.1} parent=27 // pred_region
          %s159 = smul.u32 16, %s13
          %p160 = scmp.lt.s32.totalorder %s159, 31
          %s161 = scalar_select %p160, %s159, 31
          %s162 = smul.addr %s161, 8
          %s163 = scalar_lea.vmem %s0, %s162
          %s164 = smul.u32 16, %s13
        $region32: #{tpu_custom_call.1} parent=27 // pred_fallthru
          _
      $region28: #{tpu_custom_call.1} parent=5 // pred_fallthru
        _
      %p165 = scmp.le.s32.totalorder 1, %s13
      %p166 = scmp.lt.s32.totalorder %s13, 3
      %p167 = pnand %p165, %p166
      %p168 = pneg %p167
      // Predicated region
      $region33: #{tpu_custom_call.1} parent=5 // pred_check
        _
      $region34: #{tpu_custom_call.1} parent=5 // pred_check_branch
        %170 = sbr.rel (%p167) target = $region36
      $region35: #{tpu_custom_call.1} parent=5 // pred_region
        %s171 = ssub.s32 %s13, 1
        %s172 = smul.u32 16, %s18
        %p173 = scmp.lt.s32.totalorder %s172, 31
        %s174 = scalar_select %p173, %s172, 31
        %s175 = smul.addr %s174, 8
        %s176 = scalar_lea.vmem %s0, %s175
        %p177 = pneg %p39
        %p178 = pneg %p36
        %p179 = pneg %p60
        %p180 = pneg %p57
        %p181 = pneg %p81
        %p182 = pneg %p78
        %p183 = pneg %p102
        %p184 = pneg %p99
        %p185 = pneg %p128
        %p186 = pneg %p125
        %s187 = sand.u32 %s115, 1
        %s188 = scalar_lea.sflag [#allocation3], %s187
        %s189 = sand.u32 %s115, 1
        %s190 = smul.addr %s189, 128
        %s191 = scalar_lea.vmem [#allocation2], %s190
        %s192 = smul.u32 16, %s18
        %p193 = scmp.lt.s32.totalorder %s192, 31
        %s194 = scalar_select %p193, %s192, 31
        %s195 = smul.addr %s194, 8
        %s196 = scalar_lea.vmem %s0, %s195
        %s197 = smul.u32 16, %s18
        %s198 = smul.u32 16, %s18
        %v199 = vld [vmem:[%s196] sm:$0xff]
        %v200 = vld [vmem:[%s196 + $0x8] sm:$0xff]
        %v201 = vld [vmem:[%s196 + $0x10] sm:$0xff]
        %v202 = vld [vmem:[%s196 + $0x18] sm:$0xff]
        %v203 = vld [vmem:[%s196 + $0x20] sm:$0xff]
        %v204 = vld [vmem:[%s196 + $0x28] sm:$0xff]
        %v205 = vld [vmem:[%s196 + $0x30] sm:$0xff]
        %v206 = vld [vmem:[%s196 + $0x38] sm:$0xff]
        %v207 = vld [vmem:[%s196 + $0x40] sm:$0xff]
        %v208 = vld [vmem:[%s196 + $0x48] sm:$0xff]
        %v209 = vld [vmem:[%s196 + $0x50] sm:$0xff]
        %v210 = vld [vmem:[%s196 + $0x58] sm:$0xff]
        %v211 = vld [vmem:[%s196 + $0x60] sm:$0xff]
        %v212 = vld [vmem:[%s196 + $0x68] sm:$0xff]
        %v213 = vld [vmem:[%s196 + $0x70] sm:$0xff]
        %v214 = vld [vmem:[%s196 + $0x78] sm:$0xff]
        %v215 = vlaneseq
        %v216 = vand.u32 %v215, 127
        %217 = vset.pattern.permute.xlu0 0
        %218 = vperm.xlu0 %217, %v199
        %v219 = vpop.permute.xlu0 %218
        %220 = vset.pattern.permute.xlu0 0
        %221 = vperm.xlu0 %220, %v200
        %v222 = vpop.permute.xlu0 %221
        %223 = vset.pattern.permute.xlu0 0
        %224 = vperm.xlu0 %223, %v201
        %v225 = vpop.permute.xlu0 %224
        %226 = vset.pattern.permute.xlu0 0
        %227 = vperm.xlu0 %226, %v202
        %v228 = vpop.permute.xlu0 %227
        %229 = vset.pattern.permute.xlu0 0
        %230 = vperm.xlu0 %229, %v203
        %v231 = vpop.permute.xlu0 %230
        %232 = vset.pattern.permute.xlu0 0
        %233 = vperm.xlu0 %232, %v204
        %v234 = vpop.permute.xlu0 %233
        %235 = vset.pattern.permute.xlu0 0
        %236 = vperm.xlu0 %235, %v205
        %v237 = vpop.permute.xlu0 %236
        %238 = vset.pattern.permute.xlu0 0
        %239 = vperm.xlu0 %238, %v206
        %v240 = vpop.permute.xlu0 %239
        %241 = vset.pattern.permute.xlu0 0
        %242 = vperm.xlu0 %241, %v207
        %v243 = vpop.permute.xlu0 %242
        %244 = vset.pattern.permute.xlu0 0
        %245 = vperm.xlu0 %244, %v208
        %v246 = vpop.permute.xlu0 %245
        %247 = vset.pattern.permute.xlu0 0
        %248 = vperm.xlu0 %247, %v209
        %v249 = vpop.permute.xlu0 %248
        %250 = vset.pattern.permute.xlu0 0
        %251 = vperm.xlu0 %250, %v210
        %v252 = vpop.permute.xlu0 %251
        %253 = vset.pattern.permute.xlu0 0
        %254 = vperm.xlu0 %253, %v211
        %v255 = vpop.permute.xlu0 %254
        %256 = vset.pattern.permute.xlu0 0
        %257 = vperm.xlu0 %256, %v212
        %v258 = vpop.permute.xlu0 %257
        %259 = vset.pattern.permute.xlu0 0
        %260 = vperm.xlu0 %259, %v213
        %v261 = vpop.permute.xlu0 %260
        %262 = vset.pattern.permute.xlu0 0
        %263 = vperm.xlu0 %262, %v214
        %v264 = vpop.permute.xlu0 %263
        %vm265 = vcmp.eq.s32.totalorder %v219, %v216
        %vm266 = vcmp.eq.s32.totalorder %v222, %v216
        %vm267 = vcmp.eq.s32.totalorder %v225, %v216
        %vm268 = vcmp.eq.s32.totalorder %v228, %v216
        %vm269 = vcmp.eq.s32.totalorder %v231, %v216
        %vm270 = vcmp.eq.s32.totalorder %v234, %v216
        %vm271 = vcmp.eq.s32.totalorder %v237, %v216
        %vm272 = vcmp.eq.s32.totalorder %v240, %v216
        %vm273 = vcmp.eq.s32.totalorder %v243, %v216
        %vm274 = vcmp.eq.s32.totalorder %v246, %v216
        %vm275 = vcmp.eq.s32.totalorder %v249, %v216
        %vm276 = vcmp.eq.s32.totalorder %v252, %v216
        %vm277 = vcmp.eq.s32.totalorder %v255, %v216
        %vm278 = vcmp.eq.s32.totalorder %v258, %v216
        %vm279 = vcmp.eq.s32.totalorder %v261, %v216
        %vm280 = vcmp.eq.s32.totalorder %v264, %v216
        %v281 = vsel %vm265, 1, 0
        %v282 = vsel %vm266, 1, 0
        %v283 = vsel %vm267, 1, 0
        %v284 = vsel %vm268, 1, 0
        %v285 = vsel %vm269, 1, 0
        %v286 = vsel %vm270, 1, 0
        %v287 = vsel %vm271, 1, 0
        %v288 = vsel %vm272, 1, 0
        %v289 = vsel %vm273, 1, 0
        %v290 = vsel %vm274, 1, 0
        %v291 = vsel %vm275, 1, 0
        %v292 = vsel %vm276, 1, 0
        %v293 = vsel %vm277, 1, 0
        %v294 = vsel %vm278, 1, 0
        %v295 = vsel %vm279, 1, 0
        %v296 = vsel %vm280, 1, 0
        %v297 = vcvt.s32.f32 %v281
        %v298 = vcvt.s32.f32 %v282
        %v299 = vcvt.s32.f32 %v283
        %v300 = vcvt.s32.f32 %v284
        %v301 = vcvt.s32.f32 %v285
        %v302 = vcvt.s32.f32 %v286
        %v303 = vcvt.s32.f32 %v287
        %v304 = vcvt.s32.f32 %v288
        %v305 = vcvt.s32.f32 %v289
        %v306 = vcvt.s32.f32 %v290
        %v307 = vcvt.s32.f32 %v291
        %v308 = vcvt.s32.f32 %v292
        %v309 = vcvt.s32.f32 %v293
        %v310 = vcvt.s32.f32 %v294
        %v311 = vcvt.s32.f32 %v295
        %v312 = vcvt.s32.f32 %v296
        %v313 = vadd.f32 %v297, 0.0
        %v314 = vadd.f32 %v298, 0.0
        %v315 = vadd.f32 %v299, 0.0
        %v316 = vadd.f32 %v300, 0.0
        %v317 = vadd.f32 %v301, 0.0
        %v318 = vadd.f32 %v302, 0.0
        %v319 = vadd.f32 %v303, 0.0
        %v320 = vadd.f32 %v304, 0.0
        %v321 = vadd.f32 %v305, 0.0
        %v322 = vadd.f32 %v306, 0.0
        %v323 = vadd.f32 %v307, 0.0
        %v324 = vadd.f32 %v308, 0.0
        %v325 = vadd.f32 %v309, 0.0
        %v326 = vadd.f32 %v310, 0.0
        %v327 = vadd.f32 %v311, 0.0
        %v328 = vadd.f32 %v312, 0.0
        %329 = vset.pattern.permute.xlu0 1
        %330 = vperm.xlu0 %329, %v199
        %v331 = vpop.permute.xlu0 %330
        %332 = vset.pattern.permute.xlu0 1
        %333 = vperm.xlu0 %332, %v200
        %v334 = vpop.permute.xlu0 %333
        %335 = vset.pattern.permute.xlu0 1
        %336 = vperm.xlu0 %335, %v201
        %v337 = vpop.permute.xlu0 %336
        %338 = vset.pattern.permute.xlu0 1
        %339 = vperm.xlu0 %338, %v202
        %v340 = vpop.permute.xlu0 %339
        %341 = vset.pattern.permute.xlu0 1
        %342 = vperm.xlu0 %341, %v203
        %v343 = vpop.permute.xlu0 %342
        %344 = vset.pattern.permute.xlu0 1
        %345 = vperm.xlu0 %344, %v204
        %v346 = vpop.permute.xlu0 %345
        %347 = vset.pattern.permute.xlu0 1
        %348 = vperm.xlu0 %347, %v205
        %v349 = vpop.permute.xlu0 %348
        %350 = vset.pattern.permute.xlu0 1
        %351 = vperm.xlu0 %350, %v206
        %v352 = vpop.permute.xlu0 %351
        %353 = vset.pattern.permute.xlu0 1
        %354 = vperm.xlu0 %353, %v207
        %v355 = vpop.permute.xlu0 %354
        %356 = vset.pattern.permute.xlu0 1
        %357 = vperm.xlu0 %356, %v208
        %v358 = vpop.permute.xlu0 %357
        %359 = vset.pattern.permute.xlu0 1
        %360 = vperm.xlu0 %359, %v209
        %v361 = vpop.permute.xlu0 %360
        %362 = vset.pattern.permute.xlu0 1
        %363 = vperm.xlu0 %362, %v210
        %v364 = vpop.permute.xlu0 %363
        %365 = vset.pattern.permute.xlu0 1
        %366 = vperm.xlu0 %365, %v211
        %v367 = vpop.permute.xlu0 %366
        %368 = vset.pattern.permute.xlu0 1
        %369 = vperm.xlu0 %368, %v212
        %v370 = vpop.permute.xlu0 %369
        %371 = vset.pattern.permute.xlu0 1
        %372 = vperm.xlu0 %371, %v213
        %v373 = vpop.permute.xlu0 %372
        %374 = vset.pattern.permute.xlu0 1
        %375 = vperm.xlu0 %374, %v214
        %v376 = vpop.permute.xlu0 %375
        %vm377 = vcmp.eq.s32.totalorder %v331, %v216
        %vm378 = vcmp.eq.s32.totalorder %v334, %v216
        %vm379 = vcmp.eq.s32.totalorder %v337, %v216
        %vm380 = vcmp.eq.s32.totalorder %v340, %v216
        %vm381 = vcmp.eq.s32.totalorder %v343, %v216
        %vm382 = vcmp.eq.s32.totalorder %v346, %v216
        %vm383 = vcmp.eq.s32.totalorder %v349, %v216
        %vm384 = vcmp.eq.s32.totalorder %v352, %v216
        %vm385 = vcmp.eq.s32.totalorder %v355, %v216
        %vm386 = vcmp.eq.s32.totalorder %v358, %v216
        %vm387 = vcmp.eq.s32.totalorder %v361, %v216
        %vm388 = vcmp.eq.s32.totalorder %v364, %v216
        %vm389 = vcmp.eq.s32.totalorder %v367, %v216
        %vm390 = vcmp.eq.s32.totalorder %v370, %v216
        %vm391 = vcmp.eq.s32.totalorder %v373, %v216
        %vm392 = vcmp.eq.s32.totalorder %v376, %v216
        %v393 = vsel %vm377, 1, 0
        %v394 = vsel %vm378, 1, 0
        %v395 = vsel %vm379, 1, 0
        %v396 = vsel %vm380, 1, 0
        %v397 = vsel %vm381, 1, 0
        %v398 = vsel %vm382, 1, 0
        %v399 = vsel %vm383, 1, 0
        %v400 = vsel %vm384, 1, 0
        %v401 = vsel %vm385, 1, 0
        %v402 = vsel %vm386, 1, 0
        %v403 = vsel %vm387, 1, 0
        %v404 = vsel %vm388, 1, 0
        %v405 = vsel %vm389, 1, 0
        %v406 = vsel %vm390, 1, 0
        %v407 = vsel %vm391, 1, 0
        %v408 = vsel %vm392, 1, 0
        %v409 = vcvt.s32.f32 %v393
        %v410 = vcvt.s32.f32 %v394
        %v411 = vcvt.s32.f32 %v395
        %v412 = vcvt.s32.f32 %v396
        %v413 = vcvt.s32.f32 %v397
        %v414 = vcvt.s32.f32 %v398
        %v415 = vcvt.s32.f32 %v399
        %v416 = vcvt.s32.f32 %v400
        %v417 = vcvt.s32.f32 %v401
        %v418 = vcvt.s32.f32 %v402
        %v419 = vcvt.s32.f32 %v403
        %v420 = vcvt.s32.f32 %v404
        %v421 = vcvt.s32.f32 %v405
        %v422 = vcvt.s32.f32 %v406
        %v423 = vcvt.s32.f32 %v407
        %v424 = vcvt.s32.f32 %v408
        %v425 = vadd.f32 %v313, %v409
        %v426 = vadd.f32 %v314, %v410
        %v427 = vadd.f32 %v315, %v411
        %v428 = vadd.f32 %v316, %v412
        %v429 = vadd.f32 %v317, %v413
        %v430 = vadd.f32 %v318, %v414
        %v431 = vadd.f32 %v319, %v415
        %v432 = vadd.f32 %v320, %v416
        %v433 = vadd.f32 %v321, %v417
        %v434 = vadd.f32 %v322, %v418
        %v435 = vadd.f32 %v323, %v419
        %v436 = vadd.f32 %v324, %v420
        %v437 = vadd.f32 %v325, %v421
        %v438 = vadd.f32 %v326, %v422
        %v439 = vadd.f32 %v327, %v423
        %v440 = vadd.f32 %v328, %v424
        %441 = vset.pattern.permute.xlu0 2
        %442 = vperm.xlu0 %441, %v199
        %v443 = vpop.permute.xlu0 %442
        %444 = vset.pattern.permute.xlu0 2
        %445 = vperm.xlu0 %444, %v200
        %v446 = vpop.permute.xlu0 %445
        %447 = vset.pattern.permute.xlu0 2
        %448 = vperm.xlu0 %447, %v201
        %v449 = vpop.permute.xlu0 %448
        %450 = vset.pattern.permute.xlu0 2
        %451 = vperm.xlu0 %450, %v202
        %v452 = vpop.permute.xlu0 %451
        %453 = vset.pattern.permute.xlu0 2
        %454 = vperm.xlu0 %453, %v203
        %v455 = vpop.permute.xlu0 %454
        %456 = vset.pattern.permute.xlu0 2
        %457 = vperm.xlu0 %456, %v204
        %v458 = vpop.permute.xlu0 %457
        %459 = vset.pattern.permute.xlu0 2
        %460 = vperm.xlu0 %459, %v205
        %v461 = vpop.permute.xlu0 %460
        %462 = vset.pattern.permute.xlu0 2
        %463 = vperm.xlu0 %462, %v206
        %v464 = vpop.permute.xlu0 %463
        %465 = vset.pattern.permute.xlu0 2
        %466 = vperm.xlu0 %465, %v207
        %v467 = vpop.permute.xlu0 %466
        %468 = vset.pattern.permute.xlu0 2
        %469 = vperm.xlu0 %468, %v208
        %v470 = vpop.permute.xlu0 %469
        %471 = vset.pattern.permute.xlu0 2
        %472 = vperm.xlu0 %471, %v209
        %v473 = vpop.permute.xlu0 %472
        %474 = vset.pattern.permute.xlu0 2
        %475 = vperm.xlu0 %474, %v210
        %v476 = vpop.permute.xlu0 %475
        %477 = vset.pattern.permute.xlu0 2
        %478 = vperm.xlu0 %477, %v211
        %v479 = vpop.permute.xlu0 %478
        %480 = vset.pattern.permute.xlu0 2
        %481 = vperm.xlu0 %480, %v212
        %v482 = vpop.permute.xlu0 %481
        %483 = vset.pattern.permute.xlu0 2
        %484 = vperm.xlu0 %483, %v213
        %v485 = vpop.permute.xlu0 %484
        %486 = vset.pattern.permute.xlu0 2
        %487 = vperm.xlu0 %486, %v214
        %v488 = vpop.permute.xlu0 %487
        %vm489 = vcmp.eq.s32.totalorder %v443, %v216
        %vm490 = vcmp.eq.s32.totalorder %v446, %v216
        %vm491 = vcmp.eq.s32.totalorder %v449, %v216
        %vm492 = vcmp.eq.s32.totalorder %v452, %v216
        %vm493 = vcmp.eq.s32.totalorder %v455, %v216
        %vm494 = vcmp.eq.s32.totalorder %v458, %v216
        %vm495 = vcmp.eq.s32.totalorder %v461, %v216
        %vm496 = vcmp.eq.s32.totalorder %v464, %v216
        %vm497 = vcmp.eq.s32.totalorder %v467, %v216
        %vm498 = vcmp.eq.s32.totalorder %v470, %v216
        %vm499 = vcmp.eq.s32.totalorder %v473, %v216
        %vm500 = vcmp.eq.s32.totalorder %v476, %v216
        %vm501 = vcmp.eq.s32.totalorder %v479, %v216
        %vm502 = vcmp.eq.s32.totalorder %v482, %v216
        %vm503 = vcmp.eq.s32.totalorder %v485, %v216
        %vm504 = vcmp.eq.s32.totalorder %v488, %v216
        %v505 = vsel %vm489, 1, 0
        %v506 = vsel %vm490, 1, 0
        %v507 = vsel %vm491, 1, 0
        %v508 = vsel %vm492, 1, 0
        %v509 = vsel %vm493, 1, 0
        %v510 = vsel %vm494, 1, 0
        %v511 = vsel %vm495, 1, 0
        %v512 = vsel %vm496, 1, 0
        %v513 = vsel %vm497, 1, 0
        %v514 = vsel %vm498, 1, 0
        %v515 = vsel %vm499, 1, 0
        %v516 = vsel %vm500, 1, 0
        %v517 = vsel %vm501, 1, 0
        %v518 = vsel %vm502, 1, 0
        %v519 = vsel %vm503, 1, 0
        %v520 = vsel %vm504, 1, 0
        %v521 = vcvt.s32.f32 %v505
        %v522 = vcvt.s32.f32 %v506
        %v523 = vcvt.s32.f32 %v507
        %v524 = vcvt.s32.f32 %v508
        %v525 = vcvt.s32.f32 %v509
        %v526 = vcvt.s32.f32 %v510
        %v527 = vcvt.s32.f32 %v511
        %v528 = vcvt.s32.f32 %v512
        %v529 = vcvt.s32.f32 %v513
        %v530 = vcvt.s32.f32 %v514
        %v531 = vcvt.s32.f32 %v515
        %v532 = vcvt.s32.f32 %v516
        %v533 = vcvt.s32.f32 %v517
        %v534 = vcvt.s32.f32 %v518
        %v535 = vcvt.s32.f32 %v519
        %v536 = vcvt.s32.f32 %v520
        %v537 = vadd.f32 %v425, %v521
        %v538 = vadd.f32 %v426, %v522
        %v539 = vadd.f32 %v427, %v523
        %v540 = vadd.f32 %v428, %v524
        %v541 = vadd.f32 %v429, %v525
        %v542 = vadd.f32 %v430, %v526
        %v543 = vadd.f32 %v431, %v527
        %v544 = vadd.f32 %v432, %v528
        %v545 = vadd.f32 %v433, %v529
        %v546 = vadd.f32 %v434, %v530
        %v547 = vadd.f32 %v435, %v531
        %v548 = vadd.f32 %v436, %v532
        %v549 = vadd.f32 %v437, %v533
        %v550 = vadd.f32 %v438, %v534
        %v551 = vadd.f32 %v439, %v535
        %v552 = vadd.f32 %v440, %v536
        %553 = vset.pattern.permute.xlu0 3
        %554 = vperm.xlu0 %553, %v199
        %v555 = vpop.permute.xlu0 %554
        %556 = vset.pattern.permute.xlu0 3
        %557 = vperm.xlu0 %556, %v200
        %v558 = vpop.permute.xlu0 %557
        %559 = vset.pattern.permute.xlu0 3
        %560 = vperm.xlu0 %559, %v201
        %v561 = vpop.permute.xlu0 %560
        %562 = vset.pattern.permute.xlu0 3
        %563 = vperm.xlu0 %562, %v202
        %v564 = vpop.permute.xlu0 %563
        %565 = vset.pattern.permute.xlu0 3
        %566 = vperm.xlu0 %565, %v203
        %v567 = vpop.permute.xlu0 %566
        %568 = vset.pattern.permute.xlu0 3
        %569 = vperm.xlu0 %568, %v204
        %v570 = vpop.permute.xlu0 %569
        %571 = vset.pattern.permute.xlu0 3
        %572 = vperm.xlu0 %571, %v205
        %v573 = vpop.permute.xlu0 %572
        %574 = vset.pattern.permute.xlu0 3
        %575 = vperm.xlu0 %574, %v206
        %v576 = vpop.permute.xlu0 %575
        %577 = vset.pattern.permute.xlu0 3
        %578 = vperm.xlu0 %577, %v207
        %v579 = vpop.permute.xlu0 %578
        %580 = vset.pattern.permute.xlu0 3
        %581 = vperm.xlu0 %580, %v208
        %v582 = vpop.permute.xlu0 %581
        %583 = vset.pattern.permute.xlu0 3
        %584 = vperm.xlu0 %583, %v209
        %v585 = vpop.permute.xlu0 %584
        %586 = vset.pattern.permute.xlu0 3
        %587 = vperm.xlu0 %586, %v210
        %v588 = vpop.permute.xlu0 %587
        %589 = vset.pattern.permute.xlu0 3
        %590 = vperm.xlu0 %589, %v211
        %v591 = vpop.permute.xlu0 %590
        %592 = vset.pattern.permute.xlu0 3
        %593 = vperm.xlu0 %592, %v212
        %v594 = vpop.permute.xlu0 %593
        %595 = vset.pattern.permute.xlu0 3
        %596 = vperm.xlu0 %595, %v213
        %v597 = vpop.permute.xlu0 %596
        %598 = vset.pattern.permute.xlu0 3
        %599 = vperm.xlu0 %598, %v214
        %v600 = vpop.permute.xlu0 %599
        %vm601 = vcmp.eq.s32.totalorder %v555, %v216
        %vm602 = vcmp.eq.s32.totalorder %v558, %v216
        %vm603 = vcmp.eq.s32.totalorder %v561, %v216
        %vm604 = vcmp.eq.s32.totalorder %v564, %v216
        %vm605 = vcmp.eq.s32.totalorder %v567, %v216
        %vm606 = vcmp.eq.s32.totalorder %v570, %v216
        %vm607 = vcmp.eq.s32.totalorder %v573, %v216
        %vm608 = vcmp.eq.s32.totalorder %v576, %v216
        %vm609 = vcmp.eq.s32.totalorder %v579, %v216
        %vm610 = vcmp.eq.s32.totalorder %v582, %v216
        %vm611 = vcmp.eq.s32.totalorder %v585, %v216
        %vm612 = vcmp.eq.s32.totalorder %v588, %v216
        %vm613 = vcmp.eq.s32.totalorder %v591, %v216
        %vm614 = vcmp.eq.s32.totalorder %v594, %v216
        %vm615 = vcmp.eq.s32.totalorder %v597, %v216
        %vm616 = vcmp.eq.s32.totalorder %v600, %v216
        %v617 = vsel %vm601, 1, 0
        %v618 = vsel %vm602, 1, 0
        %v619 = vsel %vm603, 1, 0
        %v620 = vsel %vm604, 1, 0
        %v621 = vsel %vm605, 1, 0
        %v622 = vsel %vm606, 1, 0
        %v623 = vsel %vm607, 1, 0
        %v624 = vsel %vm608, 1, 0
        %v625 = vsel %vm609, 1, 0
        %v626 = vsel %vm610, 1, 0
        %v627 = vsel %vm611, 1, 0
        %v628 = vsel %vm612, 1, 0
        %v629 = vsel %vm613, 1, 0
        %v630 = vsel %vm614, 1, 0
        %v631 = vsel %vm615, 1, 0
        %v632 = vsel %vm616, 1, 0
        %v633 = vcvt.s32.f32 %v617
        %v634 = vcvt.s32.f32 %v618
        %v635 = vcvt.s32.f32 %v619
        %v636 = vcvt.s32.f32 %v620
        %v637 = vcvt.s32.f32 %v621
        %v638 = vcvt.s32.f32 %v622
        %v639 = vcvt.s32.f32 %v623
        %v640 = vcvt.s32.f32 %v624
        %v641 = vcvt.s32.f32 %v625
        %v642 = vcvt.s32.f32 %v626
        %v643 = vcvt.s32.f32 %v627
        %v644 = vcvt.s32.f32 %v628
        %v645 = vcvt.s32.f32 %v629
        %v646 = vcvt.s32.f32 %v630
        %v647 = vcvt.s32.f32 %v631
        %v648 = vcvt.s32.f32 %v632
        %v649 = vadd.f32 %v537, %v633
        %v650 = vadd.f32 %v538, %v634
        %v651 = vadd.f32 %v539, %v635
        %v652 = vadd.f32 %v540, %v636
        %v653 = vadd.f32 %v541, %v637
        %v654 = vadd.f32 %v542, %v638
        %v655 = vadd.f32 %v543, %v639
        %v656 = vadd.f32 %v544, %v640
        %v657 = vadd.f32 %v545, %v641
        %v658 = vadd.f32 %v546, %v642
        %v659 = vadd.f32 %v547, %v643
        %v660 = vadd.f32 %v548, %v644
        %v661 = vadd.f32 %v549, %v645
        %v662 = vadd.f32 %v550, %v646
        %v663 = vadd.f32 %v551, %v647
        %v664 = vadd.f32 %v552, %v648
        %v665 = vmul.f32 %v649, 0.25
        %v666 = vmul.f32 %v650, 0.25
        %v667 = vmul.f32 %v651, 0.25
        %v668 = vmul.f32 %v652, 0.25
        %v669 = vmul.f32 %v653, 0.25
        %v670 = vmul.f32 %v654, 0.25
        %v671 = vmul.f32 %v655, 0.25
        %v672 = vmul.f32 %v656, 0.25
        %v673 = vmul.f32 %v657, 0.25
        %v674 = vmul.f32 %v658, 0.25
        %v675 = vmul.f32 %v659, 0.25
        %v676 = vmul.f32 %v660, 0.25
        %v677 = vmul.f32 %v661, 0.25
        %v678 = vmul.f32 %v662, 0.25
        %v679 = vmul.f32 %v663, 0.25
        %v680 = vmul.f32 %v664, 0.25
        %v681 = vld [vmem:[%s1] sm:$0xff]
        %v682 = vld [vmem:[%s1 + $0x8] sm:$0xff]
        %v683 = vld [vmem:[%s1 + $0x10] sm:$0xff]
        %v684 = vld [vmem:[%s1 + $0x18] sm:$0xff]
        %v685 = vld [vmem:[%s1 + $0x20] sm:$0xff]
        %v686 = vld [vmem:[%s1 + $0x28] sm:$0xff]
        %v687 = vld [vmem:[%s1 + $0x30] sm:$0xff]
        %v688 = vld [vmem:[%s1 + $0x38] sm:$0xff]
        %v689 = vld [vmem:[%s1 + $0x40] sm:$0xff]
        %v690 = vld [vmem:[%s1 + $0x48] sm:$0xff]
        %v691 = vld [vmem:[%s1 + $0x50] sm:$0xff]
        %v692 = vld [vmem:[%s1 + $0x58] sm:$0xff]
        %v693 = vld [vmem:[%s1 + $0x60] sm:$0xff]
        %v694 = vld [vmem:[%s1 + $0x68] sm:$0xff]
        %v695 = vld [vmem:[%s1 + $0x70] sm:$0xff]
        %v696 = vld [vmem:[%s1 + $0x78] sm:$0xff]
        %697 = vmatprep.subr.mxu0 0.0
        %698 = vmatpush1.msra.mxu0 %v681
        %699 = vmatprep.subr.mxu0 0.0
        %700 = vmatpush1.msra.mxu0 %v682
        %701 = vmatprep.subr.mxu0 0.0
        %702 = vmatpush1.msra.mxu0 %v683
        %703 = vmatprep.subr.mxu0 0.0
        %704 = vmatpush1.msra.mxu0 %v684
        %705 = vmatprep.subr.mxu0 0.0
        %706 = vmatpush1.msra.mxu0 %v685
        %707 = vmatprep.subr.mxu0 0.0
        %708 = vmatpush1.msra.mxu0 %v686
        %709 = vmatprep.subr.mxu0 0.0
        %710 = vmatpush1.msra.mxu0 %v687
        %711 = vmatprep.subr.mxu0 0.0
        %712 = vmatpush1.msra.mxu0 %v688
        %713 = vmatprep.subr.mxu0 0.0
        %714 = vmatpush1.msra.mxu0 %v689
        %715 = vmatprep.subr.mxu0 0.0
        %716 = vmatpush1.msra.mxu0 %v690
        %717 = vmatprep.subr.mxu0 0.0
        %718 = vmatpush1.msra.mxu0 %v691
        %719 = vmatprep.subr.mxu0 0.0
        %720 = vmatpush1.msra.mxu0 %v692
        %721 = vmatprep.subr.mxu0 0.0
        %722 = vmatpush1.msra.mxu0 %v693
        %723 = vmatprep.subr.mxu0 0.0
        %724 = vmatpush1.msra.mxu0 %v694
        %725 = vmatprep.subr.mxu0 0.0
        %726 = vmatpush1.msra.mxu0 %v695
        %727 = vmatprep.subr.mxu0 0.0
        %728 = vmatpush1.msra.mxu0 %v696
        %729 = vmatprep.subr.mxu0 0.0
        %730 = vmatpush1.msra.mxu0 0.0
        %731 = vmatprep.subr.mxu0 0.0
        %732 = vmatpush1.msra.mxu0 0.0
        %733 = vmatprep.subr.mxu0 0.0
        %734 = vmatpush1.msra.mxu0 0.0
        %735 = vmatprep.subr.mxu0 0.0
        %736 = vmatpush1.msra.mxu0 0.0
        %737 = vmatprep.subr.mxu0 0.0
        %738 = vmatpush1.msra.mxu0 0.0
        %739 = vmatprep.subr.mxu0 0.0
        %740 = vmatpush1.msra.mxu0 0.0
        %741 = vmatprep.subr.mxu0 0.0
        %742 = vmatpush1.msra.mxu0 0.0
        %743 = vmatprep.subr.mxu0 0.0
        %744 = vmatpush1.msra.mxu0 0.0
        %745 = vmatprep.subr.mxu0 0.0
        %746 = vmatpush1.msra.mxu0 0.0
        %747 = vmatprep.subr.mxu0 0.0
        %748 = vmatpush1.msra.mxu0 0.0
        %749 = vmatprep.subr.mxu0 0.0
        %750 = vmatpush1.msra.mxu0 0.0
        %751 = vmatprep.subr.mxu0 0.0
        %752 = vmatpush1.msra.mxu0 0.0
        %753 = vmatprep.subr.mxu0 0.0
        %754 = vmatpush1.msra.mxu0 0.0
        %755 = vmatprep.subr.mxu0 0.0
        %756 = vmatpush1.msra.mxu0 0.0
        %757 = vmatprep.subr.mxu0 0.0
        %758 = vmatpush1.msra.mxu0 0.0
        %759 = vmatprep.subr.mxu0 0.0
        %760 = vmatpush1.msra.mxu0 0.0
        %761 = vmatprep.mubr.f32.mxu0 0.0
        %762 = vmatmul.mubr.f32.gmra.mrb[0].mxu0 %v665
        %v763 = vpop.f32.mrb[0].mxu0
        %v764 = vadd.f32 0.0, %v763
        %v765 = vpop.f32.mrb[0].mxu0
        %766 = vmatprep.mubr.f32.mxu0 0.0
        %767 = vmatmul.mubr.f32.gmra.mrb[0].mxu0 %v666
        %v768 = vpop.f32.mrb[0].mxu0
        %v769 = vadd.f32 0.0, %v768
        %v770 = vpop.f32.mrb[0].mxu0
        %771 = vmatprep.mubr.f32.mxu0 0.0
        %772 = vmatmul.mubr.f32.gmra.mrb[0].mxu0 %v667
        %v773 = vpop.f32.mrb[0].mxu0
        %v774 = vadd.f32 0.0, %v773
        %v775 = vpop.f32.mrb[0].mxu0
        %776 = vmatprep.mubr.f32.mxu0 0.0
        %777 = vmatmul.mubr.f32.gmra.mrb[0].mxu0 %v668
        %v778 = vpop.f32.mrb[0].mxu0
        %v779 = vadd.f32 0.0, %v778
        %v780 = vpop.f32.mrb[0].mxu0
        %781 = vmatprep.mubr.f32.mxu0 0.0
        %782 = vmatmul.mubr.f32.gmra.mrb[0].mxu0 %v669
        %v783 = vpop.f32.mrb[0].mxu0
        %v784 = vadd.f32 0.0, %v783
        %v785 = vpop.f32.mrb[0].mxu0
        %786 = vmatprep.mubr.f32.mxu0 0.0
        %787 = vmatmul.mubr.f32.gmra.mrb[0].mxu0 %v670
        %v788 = vpop.f32.mrb[0].mxu0
        %v789 = vadd.f32 0.0, %v788
        %v790 = vpop.f32.mrb[0].mxu0
        %791 = vmatprep.mubr.f32.mxu0 0.0
        %792 = vmatmul.mubr.f32.gmra.mrb[0].mxu0 %v671
        %v793 = vpop.f32.mrb[0].mxu0
        %v794 = vadd.f32 0.0, %v793
        %v795 = vpop.f32.mrb[0].mxu0
        %796 = vmatprep.mubr.f32.mxu0 0.0
        %797 = vmatmul.mubr.f32.gmra.mrb[0].mxu0 %v672
        %v798 = vpop.f32.mrb[0].mxu0
        %v799 = vadd.f32 0.0, %v798
        %v800 = vpop.f32.mrb[0].mxu0
        %801 = vmatprep.mubr.f32.mxu0 0.0
        %802 = vmatmul.mubr.f32.gmra.mrb[0].mxu0 %v673
        %v803 = vpop.f32.mrb[0].mxu0
        %v804 = vadd.f32 0.0, %v803
        %v805 = vpop.f32.mrb[0].mxu0
        %806 = vmatprep.mubr.f32.mxu0 0.0
        %807 = vmatmul.mubr.f32.gmra.mrb[0].mxu0 %v674
        %v808 = vpop.f32.mrb[0].mxu0
        %v809 = vadd.f32 0.0, %v808
        %v810 = vpop.f32.mrb[0].mxu0
        %811 = vmatprep.mubr.f32.mxu0 0.0
        %812 = vmatmul.mubr.f32.gmra.mrb[0].mxu0 %v675
        %v813 = vpop.f32.mrb[0].mxu0
        %v814 = vadd.f32 0.0, %v813
        %v815 = vpop.f32.mrb[0].mxu0
        %816 = vmatprep.mubr.f32.mxu0 0.0
        %817 = vmatmul.mubr.f32.gmra.mrb[0].mxu0 %v676
        %v818 = vpop.f32.mrb[0].mxu0
        %v819 = vadd.f32 0.0, %v818
        %v820 = vpop.f32.mrb[0].mxu0
        %821 = vmatprep.mubr.f32.mxu0 0.0
        %822 = vmatmul.mubr.f32.gmra.mrb[0].mxu0 %v677
        %v823 = vpop.f32.mrb[0].mxu0
        %v824 = vadd.f32 0.0, %v823
        %v825 = vpop.f32.mrb[0].mxu0
        %826 = vmatprep.mubr.f32.mxu0 0.0
        %827 = vmatmul.mubr.f32.gmra.mrb[0].mxu0 %v678
        %v828 = vpop.f32.mrb[0].mxu0
        %v829 = vadd.f32 0.0, %v828
        %v830 = vpop.f32.mrb[0].mxu0
        %831 = vmatprep.mubr.f32.mxu0 0.0
        %832 = vmatmul.mubr.f32.gmra.mrb[0].mxu0 %v679
        %v833 = vpop.f32.mrb[0].mxu0
        %v834 = vadd.f32 0.0, %v833
        %v835 = vpop.f32.mrb[0].mxu0
        %836 = vmatprep.mubr.f32.mxu0 0.0
        %837 = vmatmul.mubr.f32.gmra.mrb[0].mxu0 %v680
        %v838 = vpop.f32.mrb[0].mxu0
        %v839 = vadd.f32 0.0, %v838
        %v840 = vpop.f32.mrb[0].mxu0
        %841 = vdwg.mxu0
        %v842 = vld [vmem:[%s2] sm:$0xff]
        %v843 = vld [vmem:[%s2 + $0x8] sm:$0xff]
        %v844 = vld [vmem:[%s2 + $0x10] sm:$0xff]
        %v845 = vld [vmem:[%s2 + $0x18] sm:$0xff]
        %v846 = vld [vmem:[%s2 + $0x20] sm:$0xff]
        %v847 = vld [vmem:[%s2 + $0x28] sm:$0xff]
        %v848 = vld [vmem:[%s2 + $0x30] sm:$0xff]
        %v849 = vld [vmem:[%s2 + $0x38] sm:$0xff]
        %v850 = vld [vmem:[%s2 + $0x40] sm:$0xff]
        %v851 = vld [vmem:[%s2 + $0x48] sm:$0xff]
        %v852 = vld [vmem:[%s2 + $0x50] sm:$0xff]
        %v853 = vld [vmem:[%s2 + $0x58] sm:$0xff]
        %v854 = vld [vmem:[%s2 + $0x60] sm:$0xff]
        %v855 = vld [vmem:[%s2 + $0x68] sm:$0xff]
        %v856 = vld [vmem:[%s2 + $0x70] sm:$0xff]
        %v857 = vld [vmem:[%s2 + $0x78] sm:$0xff]
        %v858 = vld [vmem:[%s3] sm:$0x1]
        %v860 = vlaneseq
        %v861 = vshrl.u32 %v860, 7
        %v862 = vsub.s32 0, %v861
        %v863 = vrot.slane %v858, %v862
        %865 = vmatprep.subr.mxu0 0.0
        %866 = vmatpush1.msra.mxu0 %v842
        %867 = vmatprep.subr.mxu0 0.0
        %868 = vmatpush1.msra.mxu0 %v843
        %869 = vmatprep.subr.mxu0 0.0
        %870 = vmatpush1.msra.mxu0 %v844
        %871 = vmatprep.subr.mxu0 0.0
        %872 = vmatpush1.msra.mxu0 %v845
        %873 = vmatprep.subr.mxu0 0.0
        %874 = vmatpush1.msra.mxu0 %v846
        %875 = vmatprep.subr.mxu0 0.0
        %876 = vmatpush1.msra.mxu0 %v847
        %877 = vmatprep.subr.mxu0 0.0
        %878 = vmatpush1.msra.mxu0 %v848
        %879 = vmatprep.subr.mxu0 0.0
        %880 = vmatpush1.msra.mxu0 %v849
        %881 = vmatprep.subr.mxu0 0.0
        %882 = vmatpush1.msra.mxu0 %v850
        %883 = vmatprep.subr.mxu0 0.0
        %884 = vmatpush1.msra.mxu0 %v851
        %885 = vmatprep.subr.mxu0 0.0
        %886 = vmatpush1.msra.mxu0 %v852
        %887 = vmatprep.subr.mxu0 0.0
        %888 = vmatpush1.msra.mxu0 %v853
        %889 = vmatprep.subr.mxu0 0.0
        %890 = vmatpush1.msra.mxu0 %v854
        %891 = vmatprep.subr.mxu0 0.0
        %892 = vmatpush1.msra.mxu0 %v855
        %893 = vmatprep.subr.mxu0 0.0
        %894 = vmatpush1.msra.mxu0 %v856
        %895 = vmatprep.subr.mxu0 0.0
        %896 = vmatpush1.msra.mxu0 %v857
        %897 = vmatprep.subr.mxu0 0.0
        %898 = vmatpush1.msra.mxu0 0.0
        %899 = vmatprep.subr.mxu0 0.0
        %900 = vmatpush1.msra.mxu0 0.0
        %901 = vmatprep.subr.mxu0 0.0
        %902 = vmatpush1.msra.mxu0 0.0
        %903 = vmatprep.subr.mxu0 0.0
        %904 = vmatpush1.msra.mxu0 0.0
        %905 = vmatprep.subr.mxu0 0.0
        %906 = vmatpush1.msra.mxu0 0.0
        %907 = vmatprep.subr.mxu0 0.0
        %908 = vmatpush1.msra.mxu0 0.0
        %909 = vmatprep.subr.mxu0 0.0
        %910 = vmatpush1.msra.mxu0 0.0
        %911 = vmatprep.subr.mxu0 0.0
        %912 = vmatpush1.msra.mxu0 0.0
        %913 = vmatprep.subr.mxu0 0.0
        %914 = vmatpush1.msra.mxu0 0.0
        %915 = vmatprep.subr.mxu0 0.0
        %916 = vmatpush1.msra.mxu0 0.0
        %917 = vmatprep.subr.mxu0 0.0
        %918 = vmatpush1.msra.mxu0 0.0
        %919 = vmatprep.subr.mxu0 0.0
        %920 = vmatpush1.msra.mxu0 0.0
        %921 = vmatprep.subr.mxu0 0.0
        %922 = vmatpush1.msra.mxu0 0.0
        %923 = vmatprep.subr.mxu0 0.0
        %924 = vmatpush1.msra.mxu0 0.0
        %925 = vmatprep.subr.mxu0 0.0
        %926 = vmatpush1.msra.mxu0 0.0
        %927 = vmatprep.subr.mxu0 0.0
        %928 = vmatpush1.msra.mxu0 0.0
        %929 = vmatprep.mubr.f32.mxu0 0.0
        %930 = vmatmul.mubr.f32.gmra.mrb[0].mxu0 %v764
        %v931 = vpop.f32.mrb[0].mxu0
        %v932 = vadd.f32 %v863, %v931
        %v933 = vpop.f32.mrb[0].mxu0
        %934 = vmatprep.mubr.f32.mxu0 0.0
        %935 = vmatmul.mubr.f32.gmra.mrb[0].mxu0 %v769
        %v936 = vpop.f32.mrb[0].mxu0
        %v937 = vadd.f32 %v863, %v936
        %v938 = vpop.f32.mrb[0].mxu0
        %939 = vmatprep.mubr.f32.mxu0 0.0
        %940 = vmatmul.mubr.f32.gmra.mrb[0].mxu0 %v774
        %v941 = vpop.f32.mrb[0].mxu0
        %v942 = vadd.f32 %v863, %v941
        %v943 = vpop.f32.mrb[0].mxu0
        %944 = vmatprep.mubr.f32.mxu0 0.0
        %945 = vmatmul.mubr.f32.gmra.mrb[0].mxu0 %v779
        %v946 = vpop.f32.mrb[0].mxu0
        %v947 = vadd.f32 %v863, %v946
        %v948 = vpop.f32.mrb[0].mxu0
        %949 = vmatprep.mubr.f32.mxu0 0.0
        %950 = vmatmul.mubr.f32.gmra.mrb[0].mxu0 %v784
        %v951 = vpop.f32.mrb[0].mxu0
        %v952 = vadd.f32 %v863, %v951
        %v953 = vpop.f32.mrb[0].mxu0
        %954 = vmatprep.mubr.f32.mxu0 0.0
        %955 = vmatmul.mubr.f32.gmra.mrb[0].mxu0 %v789
        %v956 = vpop.f32.mrb[0].mxu0
        %v957 = vadd.f32 %v863, %v956
        %v958 = vpop.f32.mrb[0].mxu0
        %959 = vmatprep.mubr.f32.mxu0 0.0
        %960 = vmatmul.mubr.f32.gmra.mrb[0].mxu0 %v794
        %v961 = vpop.f32.mrb[0].mxu0
        %v962 = vadd.f32 %v863, %v961
        %v963 = vpop.f32.mrb[0].mxu0
        %964 = vmatprep.mubr.f32.mxu0 0.0
        %965 = vmatmul.mubr.f32.gmra.mrb[0].mxu0 %v799
        %v966 = vpop.f32.mrb[0].mxu0
        %v967 = vadd.f32 %v863, %v966
        %v968 = vpop.f32.mrb[0].mxu0
        %969 = vmatprep.mubr.f32.mxu0 0.0
        %970 = vmatmul.mubr.f32.gmra.mrb[0].mxu0 %v804
        %v971 = vpop.f32.mrb[0].mxu0
        %v972 = vadd.f32 %v863, %v971
        %v973 = vpop.f32.mrb[0].mxu0
        %974 = vmatprep.mubr.f32.mxu0 0.0
        %975 = vmatmul.mubr.f32.gmra.mrb[0].mxu0 %v809
        %v976 = vpop.f32.mrb[0].mxu0
        %v977 = vadd.f32 %v863, %v976
        %v978 = vpop.f32.mrb[0].mxu0
        %979 = vmatprep.mubr.f32.mxu0 0.0
        %980 = vmatmul.mubr.f32.gmra.mrb[0].mxu0 %v814
        %v981 = vpop.f32.mrb[0].mxu0
        %v982 = vadd.f32 %v863, %v981
        %v983 = vpop.f32.mrb[0].mxu0
        %984 = vmatprep.mubr.f32.mxu0 0.0
        %985 = vmatmul.mubr.f32.gmra.mrb[0].mxu0 %v819
        %v986 = vpop.f32.mrb[0].mxu0
        %v987 = vadd.f32 %v863, %v986
        %v988 = vpop.f32.mrb[0].mxu0
        %989 = vmatprep.mubr.f32.mxu0 0.0
        %990 = vmatmul.mubr.f32.gmra.mrb[0].mxu0 %v824
        %v991 = vpop.f32.mrb[0].mxu0
        %v992 = vadd.f32 %v863, %v991
        %v993 = vpop.f32.mrb[0].mxu0
        %994 = vmatprep.mubr.f32.mxu0 0.0
        %995 = vmatmul.mubr.f32.gmra.mrb[0].mxu0 %v829
        %v996 = vpop.f32.mrb[0].mxu0
        %v997 = vadd.f32 %v863, %v996
        %v998 = vpop.f32.mrb[0].mxu0
        %999 = vmatprep.mubr.f32.mxu0 0.0
        %1000 = vmatmul.mubr.f32.gmra.mrb[0].mxu0 %v834
        %v1001 = vpop.f32.mrb[0].mxu0
        %v1002 = vadd.f32 %v863, %v1001
        %v1003 = vpop.f32.mrb[0].mxu0
        %1004 = vmatprep.mubr.f32.mxu0 0.0
        %1005 = vmatmul.mubr.f32.gmra.mrb[0].mxu0 %v839
        %v1006 = vpop.f32.mrb[0].mxu0
        %v1007 = vadd.f32 %v863, %v1006
        %v1008 = vpop.f32.mrb[0].mxu0
        %1009 = vdwg.mxu0
        %1010 = vst [vmem:[%s191] sm:$0xff] %v932
        %1011 = vst [vmem:[%s191 + $0x8] sm:$0xff] %v937
        %1012 = vst [vmem:[%s191 + $0x10] sm:$0xff] %v942
        %1013 = vst [vmem:[%s191 + $0x18] sm:$0xff] %v947
        %1014 = vst [vmem:[%s191 + $0x20] sm:$0xff] %v952
        %1015 = vst [vmem:[%s191 + $0x28] sm:$0xff] %v957
        %1016 = vst [vmem:[%s191 + $0x30] sm:$0xff] %v962
        %1017 = vst [vmem:[%s191 + $0x38] sm:$0xff] %v967
        %1018 = vst [vmem:[%s191 + $0x40] sm:$0xff] %v972
        %1019 = vst [vmem:[%s191 + $0x48] sm:$0xff] %v977
        %1020 = vst [vmem:[%s191 + $0x50] sm:$0xff] %v982
        %1021 = vst [vmem:[%s191 + $0x58] sm:$0xff] %v987
        %1022 = vst [vmem:[%s191 + $0x60] sm:$0xff] %v992
        %1023 = vst [vmem:[%s191 + $0x68] sm:$0xff] %v997
        %1024 = vst [vmem:[%s191 + $0x70] sm:$0xff] %v1002
        %1025 = vst [vmem:[%s191 + $0x78] sm:$0xff] %v1007
        %s1026 = sand.u32 %s115, 1
        %s1027 = scalar_lea.sflag [#allocation3], %s1026
        %s1028 = sand.u32 %s115, 1
        %s1029 = smul.addr %s1028, 128
        %s1030 = scalar_lea.vmem [#allocation2], %s1029
        // Predicated region
        $region37: #{tpu_custom_call.1} parent=35 // pred_check
          %p1031 = pneg %p125
        $region38: #{tpu_custom_call.1} parent=35 // pred_check_branch
          %1033 = sbr.rel (%p1031) target = $region40
        $region39: #{tpu_custom_call.1} parent=35 // pred_region
          %s1034 = smul.u32 16, %s18
          %s1036 = ssub.s32 2048, 2048
          %1037 = vsyncadd %s1027, %s1036
          %s1038 = smul.addr %s1034, 128
          %s1039 = scalar_lea.hbm %s4, %s1038
          %s1040 = sshll.u32 %s1030, 4
          %s1041 = int_to_ptr.vmem [resolvable:$true] %s1040
          %1046 = dma.vmem_to_hbm [thread:$0]  %s1041, 2048, %s1039, %s1027, 128, 128, 8
        $region40: #{tpu_custom_call.1} parent=35 // pred_fallthru
          _
      $region36: #{tpu_custom_call.1} parent=5 // pred_fallthru
        _
      %p1047 = scmp.le.s32.totalorder 2, %s13
      // Predicated region
      $region41: #{tpu_custom_call.1} parent=5 // pred_check
        %p1048 = pneg %p1047
      $region42: #{tpu_custom_call.1} parent=5 // pred_check_branch
        %1050 = sbr.rel (%p1048) target = $region44
      $region43: #{tpu_custom_call.1} parent=5 // pred_region
        %s1051 = ssub.s32 %s13, 2
        // Predicated region
        $region45: #{tpu_custom_call.1} parent=43 // pred_check
          %p1052 = pneg %p131
        $region46: #{tpu_custom_call.1} parent=43 // pred_check_branch
          %1054 = sbr.rel (%p1052) target = $region48
        $region47: #{tpu_custom_call.1} parent=43 // pred_region
          %s1055 = sand.u32 %s116, 1
          %s1056 = scalar_lea.sflag [#allocation3], %s1055
          %s1057 = sand.u32 %s116, 1
          %s1058 = smul.addr %s1057, 128
          %s1059 = scalar_lea.vmem [#allocation2], %s1058
          %1060 = dma.done %s1056, 2048
        $region48: #{tpu_custom_call.1} parent=43 // pred_fallthru
          _
      $region44: #{tpu_custom_call.1} parent=5 // pred_fallthru
        _
    $region6: #{tpu_custom_call.1} parent=1 // loop_footer
      %s17 = sadd.s32 1, %s13
    $region7: #{tpu_custom_call.1} parent=1 // loop_footer_branch
      %12 = sbr.rel target = $region3
    $region8: #{tpu_custom_call.1} parent=1 // loop_exit
      _
    %1061 = vsyncpa [#allocation3], 1
    %s1062 = scalar_lea.sflag [#allocation3], 1
    %1063 = vsyncpa %s1062, 1

</llo_original>
